<compile_context>
chip_gen: v7x
topology: tpu7x:2x2x1
jax: 0.10.0
libtpu: 0.0.40
codegen_flags: <defaults>
</compile_context>

<pallas_src>
import functools

import jax
import jax.numpy as jnp
import numpy as np
from jax.experimental import pallas as pl
from jax.experimental.pallas import tpu as pltpu


_VMEM_BUDGET = 24 * 1024 * 1024        # explicit tiles + scratch + temporaries (fits v7x)
_TARGET_STEP_BYTES = 4 * 1024 * 1024   # input bytes per grid step (overhead amortization)
_VMEM_LIMIT = 48 * 1024 * 1024         # scoped limit: < v7x 64 MiB physical, >> v5e default


def _cdiv(a, b):
    return -(-a // b)


def _choose_ts(in_bpl, acc_bpl, tmp_bpl, s_cols):
    """Lane-tile size: largest multiple of 128 that fits the VMEM budget
    (2x double-buffered inputs + accumulators + f32 temporaries per lane),
    targeting ~_TARGET_STEP_BYTES of streamed input per grid step, and never
    exceeding the 128-aligned extent of the lane axis."""
    ts = min(_VMEM_BUDGET // (2 * in_bpl + acc_bpl + tmp_bpl),
             _TARGET_STEP_BYTES // in_bpl)
    ts = max(128, (ts // 128) * 128)
    cap = max(128, (s_cols // 128) * 128)
    return int(min(ts, cap))


def _pick_fold(S, eb):
    """Sublane fold factor R for the C == 1 (sigmoid) path.

    Prefer full sublane occupancy (8 rows for f32, 16 for bf16) but only when
    R | S (the reshape is then a free, layout-compatible view -- no HBM copy)
    and the folded lane extent S // R stays >= 128."""
    r_max = 8 * max(1, 4 // eb)
    for r in range(r_max, 1, -1):
        if S % r == 0 and S // r >= 128:
            return r
    if S >= 128:
        return 1
    for r in range(r_max, 1, -1):
        if S % r == 0:
            return r
    return 1


# ----------------------------------------------------------------------------
# Kernels
# ----------------------------------------------------------------------------
def _dice_kernel_softmax(x_ref, t_ref, dice_ref, acc_i_ref, acc_u_ref,
                         *, smooth, s_valid, ragged):
    # x_ref: (1, C, TS) native dtype   t_ref: (1, 1, TS) int8/int32
    # dice_ref: (1, 1, C) f32          acc_*: (C, TS) f32 scratch
    si = pl.program_id(1)
    n_s = pl.num_programs(1)

    @pl.when(si == 0)
    def _init():
        acc_i_ref[...] = jnp.zeros_like(acc_i_ref)
        acc_u_ref[...] = jnp.zeros_like(acc_u_ref)

    def accumulate(mask_tail):
        x = x_ref[0].astype(jnp.float32)                    # (C, TS) upcast in-kernel
        t = t_ref[0].astype(jnp.int32)                      # (1, TS)
        C, ts = x.shape
        if mask_tail:  # compile-time flag; this branch only runs on the last tile
            col = jax.lax.broadcasted_iota(jnp.int32, (1, ts), 1) + si * ts
            valid = col < s_valid                           # (1, TS) bool
            x = jnp.where(valid, x, 0.0)                    # keep exp() finite on OOB lanes

        # softmax over the channel (sublane) axis; exact per-column reciprocal.
        m = jnp.max(x, axis=0, keepdims=True)               # (1, TS)
        e = jnp.exp(x - m)                                  # (C, TS)
        p = e * pl.reciprocal(jnp.sum(e, axis=0, keepdims=True), approx=False)

        # one-hot as a predicate (no f32 one-hot materialized).
        # NOTE: labels outside [0, C) yield an all-false row (torch scatter_
        # would error) -- same silent behavior as typical JAX one-hot code.
        cls = jax.lax.broadcasted_iota(jnp.int32, (C, ts), 0)
        eq = cls == t                                       # (C, TS) bool
        if mask_tail:
            eq = jnp.logical_and(eq, valid)
            p = jnp.where(valid, p, 0.0)

        # lane-wide partial sums: pure VPU adds; cross-lane reduce deferred.
        acc_i_ref[...] += jnp.where(eq, p, 0.0)             # intersection partials
        acc_u_ref[...] += p * p + eq.astype(jnp.float32)    # union partials

    if ragged:
        @pl.when(si < n_s - 1)
        def _hot():
            accumulate(False)

        @pl.when(si == n_s - 1)
        def _tail():
            accumulate(True)
    else:
        accumulate(False)

    @pl.when(si == n_s - 1)
    def _finalize():
        inter = jnp.sum(acc_i_ref[...], axis=1)             # (C,) single XLU reduce
        union = jnp.sum(acc_u_ref[...], axis=1)             # (C,)
        dice_ref[0, 0, :] = (2.0 * inter + smooth) / (union + smooth)


def _dice_kernel_sigmoid(x_ref, t_ref, dice_ref, acc_i_ref, acc_u_ref,
                         *, smooth, cols_valid, ragged):
    # x_ref: (1, R, TS) native dtype   t_ref: (1, R, TS) int8
    # dice_ref: (1, 1, 1) f32          acc_*: (R, TS) f32 scratch
    si = pl.program_id(1)
    n_s = pl.num_programs(1)

    @pl.when(si == 0)
    def _init():
        acc_i_ref[...] = jnp.zeros_like(acc_i_ref)
        acc_u_ref[...] = jnp.zeros_like(acc_u_ref)

    def accumulate(mask_tail):
        x = x_ref[0].astype(jnp.float32)                    # (R, TS)
        t = t_ref[0].astype(jnp.float32)                    # (R, TS)
        ts = x.shape[1]
        if mask_tail:  # compile-time flag; only exists/runs on the last tile
            col = jax.lax.broadcasted_iota(jnp.int32, (1, ts), 1) + si * ts
            valid = col < cols_valid                        # (1, TS) bool
            x = jnp.where(valid, x, 0.0)
            t = jnp.where(valid, t, 0.0)
        p = jax.nn.sigmoid(x)
        if mask_tail:
            p = jnp.where(valid, p, 0.0)

        acc_i_ref[...] += p * t
        acc_u_ref[...] += p * p + t

    if ragged:
        @pl.when(si < n_s - 1)
        def _hot():
            accumulate(False)

        @pl.when(si == n_s - 1)
        def _tail():
            accumulate(True)
    else:
        accumulate(False)

    @pl.when(si == n_s - 1)
    def _finalize():
        inter = jnp.sum(acc_i_ref[...], keepdims=True)      # (1, 1)
        union = jnp.sum(acc_u_ref[...], keepdims=True)
        dice_ref[0] = (2.0 * inter + smooth) / (union + smooth)


# ----------------------------------------------------------------------------
# Wrappers
# ----------------------------------------------------------------------------
def _dice_cn(x, t8, eb, smooth):
    """Multi-class (softmax) path.  x: (N, C, S) native dtype, t8: (N, 1, S) int8."""
    N, C, S = x.shape
    ts = _choose_ts(C * eb + t8.dtype.itemsize, 8 * C, 16 * C, S)
    n_s = _cdiv(S, ts)
    ragged = (S % ts) != 0

    kernel = functools.partial(_dice_kernel_softmax, smooth=smooth,
                               s_valid=S, ragged=ragged)
    dice = pl.pallas_call(
        kernel,
        out_shape=jax.ShapeDtypeStruct((N, 1, C), jnp.float32),
        grid=(N, n_s),
        in_specs=[
            pl.BlockSpec((1, C, ts), lambda n, s: (n, 0, s)),
            pl.BlockSpec((1, 1, ts), lambda n, s: (n, 0, s)),
        ],
        out_specs=pl.BlockSpec((1, 1, C), lambda n, s: (n, 0, 0)),
        scratch_shapes=[pltpu.VMEM((C, ts), jnp.float32),
                        pltpu.VMEM((C, ts), jnp.float32)],
        compiler_params=pltpu.CompilerParams(
            dimension_semantics=("parallel", "arbitrary"),
            vmem_limit_bytes=_VMEM_LIMIT),
        cost_estimate=pl.CostEstimate(
            flops=12 * N * C * S,
            transcendentals=N * C * S,
            bytes_accessed=N * S * (C * eb + t8.dtype.itemsize) + N * C * 4),
    )(x, t8)
    return dice.reshape(N, C)


def _dice_c1(x, t8, eb, smooth):
    """Binary (sigmoid) path with copy-free sublane fold.  x: (N, 1, S), t8: (N, 1, S) int8."""
    N, _, S = x.shape
    R = _pick_fold(S, eb)
    cols = S // R
    xf = x.reshape(N, R, cols)            # free, layout-compatible view (R | S)
    tf = t8.reshape(N, R, cols)

    ts = _choose_ts(R * (eb + 1), 8 * R, 16 * R, cols)
    n_s = _cdiv(cols, ts)
    ragged = (cols % ts) != 0

    kernel = functools.partial(_dice_kernel_sigmoid, smooth=smooth,
                               cols_valid=cols, ragged=ragged)
    dice = pl.pallas_call(
        kernel,
        out_shape=jax.ShapeDtypeStruct((N, 1, 1), jnp.float32),
        grid=(N, n_s),
        in_specs=[
            pl.BlockSpec((1, R, ts), lambda n, s: (n, 0, s)),
            pl.BlockSpec((1, R, ts), lambda n, s: (n, 0, s)),
        ],
        out_specs=pl.BlockSpec((1, 1, 1), lambda n, s: (n, 0, 0)),
        scratch_shapes=[pltpu.VMEM((R, ts), jnp.float32),
                        pltpu.VMEM((R, ts), jnp.float32)],
        compiler_params=pltpu.CompilerParams(
            dimension_semantics=("parallel", "arbitrary"),
            vmem_limit_bytes=_VMEM_LIMIT),
        cost_estimate=pl.CostEstimate(
            flops=8 * N * S,
            transcendentals=N * S,
            bytes_accessed=N * S * (eb + 1) + N * 4),
    )(xf, tf)
    return dice.reshape(N, 1)


def dice_loss(predict, target, weight=None, smooth=1e-5):
    """predict: (N, C, *spatial) float (f32/bf16); target: (N, *spatial) int labels."""
    N, C = predict.shape[:2]
    S = int(np.prod(predict.shape[2:]))
    eb = predict.dtype.itemsize

    x = predict.reshape(N, C, S)          # native dtype streamed into the kernel
    t = target.reshape(N, 1, S)
    # Stream labels narrow (4x less label DMA); the int32 upcast happens
    # in-kernel after the load.  Under jit the cast fuses with the producer.
    if C <= 127:
        t = t.astype(jnp.int8)
    elif t.dtype != jnp.int32:
        t = t.astype(jnp.int32)

    if C == 1:
        dice = _dice_c1(x, t, eb, smooth)          # (N, 1)
    else:
        dice = _dice_cn(x, t, eb, smooth)          # (N, C)

    if weight is not None:
        # Matches the applied-weight branch of the PyTorch module:
        #   dice_coef * (weight / sum(weight)) * C
        # TODO(synk): the PyTorch branch only fires on a CPU/CUDA dtype-compare
        # quirk; an explicit `weight=` argument reproduces the applied path.
        w = jnp.asarray(weight, jnp.float32)
        w = w / jnp.sum(w)
        dice = dice * w * C
    return 1.0 - jnp.mean(dice)


# ----------------------------------------------------------------------------
# Pure-JAX reference (verification only)
# ----------------------------------------------------------------------------
def _dice_loss_ref(predict, target, weight=None, smooth=1e-5):
    N, C = predict.shape[:2]
    p = predict.reshape(N, C, -1).astype(jnp.float32)
    t = target.reshape(N, -1).astype(jnp.int32)
    if C == 1:
        p = jax.nn.sigmoid(p)
        onehot = t[:, None, :].astype(jnp.float32)
    else:
        p = jax.nn.softmax(p, axis=1)
        onehot = jax.nn.one_hot(t, C, axis=1, dtype=jnp.float32)
    inter = jnp.sum(p * onehot, axis=2)
    union = jnp.sum(p * p, axis=2) + jnp.sum(onehot, axis=2)
    dice = (2.0 * inter + smooth) / (union + smooth)
    if weight is not None:
        w = jnp.asarray(weight, jnp.float32)
        w = w / jnp.sum(w)
        dice = dice * w * C
    return 1.0 - jnp.mean(dice)


if __name__ == "__main__":
    key = jax.random.PRNGKey(0)
    k1, k2, k3, k4 = jax.random.split(key, 4)

    # Multi-class (softmax) path -- DiceLoss() default: weight=None.
    N, C, H, W = 2, 4, 16, 16
    predict = jax.random.normal(k1, (N, C, H, W), dtype=jnp.float32)
    target = jax.random.randint(k2, (N, H, W), 0, C, dtype=jnp.int32)
    loss = jax.block_until_ready(dice_loss(predict, target))
    ref = _dice_loss_ref(predict, target)
    assert jnp.allclose(loss, ref, atol=1e-4, rtol=1e-4), (loss, ref)

    # Weighted multi-class path (reuses the same compiled kernel).
    wgt = [1.0, 2.0, 3.0, 4.0]
    lossw = jax.block_until_ready(dice_loss(predict, target, weight=wgt))
    refw = _dice_loss_ref(predict, target, weight=wgt)
    assert jnp.allclose(lossw, refw, atol=1e-4, rtol=1e-4), (lossw, refw)

    # Binary (sigmoid) path.
    predict1 = jax.random.normal(k3, (N, 1, H, W), dtype=jnp.float32)
    target1 = (target > 1).astype(jnp.int32)
    loss1 = jax.block_until_ready(dice_loss(predict1, target1))
    ref1 = _dice_loss_ref(predict1, target1)
    assert jnp.allclose(loss1, ref1, atol=1e-4, rtol=1e-4), (loss1, ref1)

    # Ragged spatial size (exercises the in-kernel last-tile mask, no wrapper pad).
    Hr, Wr = 15, 15
    predict2 = jax.random.normal(k4, (N, C, Hr, Wr), dtype=jnp.float32)
    target2 = jax.random.randint(k2, (N, Hr, Wr), 0, C, dtype=jnp.int32)
    loss2 = jax.block_until_ready(dice_loss(predict2, target2))
    ref2 = _dice_loss_ref(predict2, target2)
    assert jnp.allclose(loss2, ref2, atol=1e-4, rtol=1e-4), (loss2, ref2)

    predict3 = jax.random.normal(k3, (N, 1, Hr, Wr), dtype=jnp.float32)
    target3 = jax.random.randint(k2, (N, Hr, Wr), 0, 2, dtype=jnp.int32)
    loss3 = jax.block_until_ready(dice_loss(predict3, target3))
    ref3 = _dice_loss_ref(predict3, target3)
    assert jnp.allclose(loss3, ref3, atol=1e-4, rtol=1e-4), (loss3, ref3)

    print("KERNEL_OK")
</pallas_src>

<mosaic_0001>
module attributes {stable_mosaic.version = 11 : i64} {
  func.func @_dice_kernel_softmax(%arg0: i32, %arg1: i32, %arg2: memref<1x4x256xf32, #tpu.memory_space<vmem>>, %arg3: memref<1x1x256xi8, #tpu.memory_space<vmem>>, %arg4: memref<1x1x4xf32, #tpu.memory_space<vmem>>, %arg5: memref<4x256xf32, #tpu.memory_space<vmem>>, %arg6: memref<4x256xf32, #tpu.memory_space<vmem>>) attributes {dimension_semantics = [#tpu.dimension_semantics<parallel>, #tpu.dimension_semantics<arbitrary>], iteration_bounds = array<i64: 2, 1>, scalar_prefetch = 0 : i64, scratch_operands = 2 : i64, tpu.core_type = #tpu.core_type<tc>, window_params = [{transform_indices = @transform_0, window_bounds = array<i64: 1, 4, 256>}, {transform_indices = @transform_1, window_bounds = array<i64: 1, 1, 256>}, {transform_indices = @transform_2, window_bounds = array<i64: 1, 1, 4>}]} {
    %c0_i32 = arith.constant 0 : i32
    %0 = arith.cmpi eq, %arg1, %c0_i32 : i32
    %1 = arith.extui %0 : i1 to i32
    %c0_i32_0 = arith.constant 0 : i32
    %2 = arith.cmpi ne, %1, %c0_i32_0 : i32
    scf.if %2 {
      %cst_18 = arith.constant 0.000000e+00 : f32
      %36 = vector.broadcast %cst_18 : f32 to vector<4x256xf32>
      %c0_19 = arith.constant 0 : index
      %c0_20 = arith.constant 0 : index
      %37 = vector.load %arg5[%c0_19, %c0_20] : memref<4x256xf32, #tpu.memory_space<vmem>>, vector<4x256xf32>
      tpu.vector_store %arg5[%c0_19, %c0_20], %36 {strides = array<i32>} : memref<4x256xf32, #tpu.memory_space<vmem>>, vector<4x256xf32>,
      %cst_21 = arith.constant 0.000000e+00 : f32
      %38 = vector.broadcast %cst_21 : f32 to vector<4x256xf32>
      %c0_22 = arith.constant 0 : index
      %c0_23 = arith.constant 0 : index
      %39 = vector.load %arg6[%c0_22, %c0_23] : memref<4x256xf32, #tpu.memory_space<vmem>>, vector<4x256xf32>
      tpu.vector_store %arg6[%c0_22, %c0_23], %38 {strides = array<i32>} : memref<4x256xf32, #tpu.memory_space<vmem>>, vector<4x256xf32>,
    } else {
    }
    %c0 = arith.constant 0 : index
    %c0_1 = arith.constant 0 : index
    %c0_2 = arith.constant 0 : index
    %3 = vector.load %arg2[%c0, %c0_1, %c0_2] : memref<1x4x256xf32, #tpu.memory_space<vmem>>, vector<1x4x256xf32>
    %4 = vector.shape_cast %3 : vector<1x4x256xf32> to vector<4x256xf32>
    %c0_3 = arith.constant 0 : index
    %c0_4 = arith.constant 0 : index
    %c0_5 = arith.constant 0 : index
    %5 = vector.load %arg3[%c0_3, %c0_4, %c0_5] : memref<1x1x256xi8, #tpu.memory_space<vmem>>, vector<1x1x256xi8>
    %6 = vector.shape_cast %5 : vector<1x1x256xi8> to vector<1x256xi8>
    %7 = arith.extsi %6 : vector<1x256xi8> to vector<1x256xi32>
    %cst = arith.constant dense<0xFF800000> : vector<256xf32>
    %8 = vector.multi_reduction <maximumf>, %4, %cst [0] : vector<4x256xf32> to vector<256xf32>
    %9 = vector.shape_cast %8 : vector<256xf32> to vector<1x256xf32>
    %10 = vector.broadcast %9 : vector<1x256xf32> to vector<4x256xf32>
    %11 = arith.subf %4, %10 : vector<4x256xf32>
    %12 = math.exp %11 : vector<4x256xf32>
    %cst_6 = arith.constant dense<0.000000e+00> : vector<256xf32>
    %13 = vector.multi_reduction <add>, %12, %cst_6 [0] : vector<4x256xf32> to vector<256xf32>
    %14 = vector.shape_cast %13 : vector<256xf32> to vector<1x256xf32>
    %15 = tpu.reciprocal %14 : vector<1x256xf32> -> vector<1x256xf32>
    %16 = vector.broadcast %15 : vector<1x256xf32> to vector<4x256xf32>
    %17 = arith.mulf %12, %16 : vector<4x256xf32>
    %18 = tpu.iota {dimensions = array<i32: 0>} : vector<4x256xi32>
    %19 = vector.broadcast %7 : vector<1x256xi32> to vector<4x256xi32>
    %20 = arith.cmpi eq, %18, %19 : vector<4x256xi32>
    %c0_7 = arith.constant 0 : index
    %c0_8 = arith.constant 0 : index
    %21 = vector.load %arg5[%c0_7, %c0_8] : memref<4x256xf32, #tpu.memory_space<vmem>>, vector<4x256xf32>
    %cst_9 = arith.constant 0.000000e+00 : f32
    %22 = vector.broadcast %cst_9 : f32 to vector<4x256xf32>
    %23 = arith.select %20, %17, %22 : vector<4x256xi1>, vector<4x256xf32>
    %24 = arith.addf %21, %23 : vector<4x256xf32>
    %c0_10 = arith.constant 0 : index
    %c0_11 = arith.constant 0 : index
    %25 = vector.load %arg5[%c0_10, %c0_11] : memref<4x256xf32, #tpu.memory_space<vmem>>, vector<4x256xf32>
    tpu.vector_store %arg5[%c0_10, %c0_11], %24 {strides = array<i32>} : memref<4x256xf32, #tpu.memory_space<vmem>>, vector<4x256xf32>,
    %c0_12 = arith.constant 0 : index
    %c0_13 = arith.constant 0 : index
    %26 = vector.load %arg6[%c0_12, %c0_13] : memref<4x256xf32, #tpu.memory_space<vmem>>, vector<4x256xf32>
    %27 = arith.mulf %17, %17 : vector<4x256xf32>
    %28 = arith.extui %20 : vector<4x256xi1> to vector<4x256xi32>
    %29 = arith.sitofp %28 : vector<4x256xi32> to vector<4x256xf32>
    %30 = arith.addf %27, %29 : vector<4x256xf32>
    %31 = arith.addf %26, %30 : vector<4x256xf32>
    %c0_14 = arith.constant 0 : index
    %c0_15 = arith.constant 0 : index
    %32 = vector.load %arg6[%c0_14, %c0_15] : memref<4x256xf32, #tpu.memory_space<vmem>>, vector<4x256xf32>
    tpu.vector_store %arg6[%c0_14, %c0_15], %31 {strides = array<i32>} : memref<4x256xf32, #tpu.memory_space<vmem>>, vector<4x256xf32>,
    %c0_i32_16 = arith.constant 0 : i32
    %33 = arith.cmpi eq, %arg1, %c0_i32_16 : i32
    %34 = arith.extui %33 : i1 to i32
    %c0_i32_17 = arith.constant 0 : i32
    %35 = arith.cmpi ne, %34, %c0_i32_17 : i32
    scf.if %35 {
      %c0_18 = arith.constant 0 : index
      %c0_19 = arith.constant 0 : index
      %36 = vector.load %arg5[%c0_18, %c0_19] : memref<4x256xf32, #tpu.memory_space<vmem>>, vector<4x256xf32>
      %cst_20 = arith.constant dense<0.000000e+00> : vector<4xf32>
      %37 = vector.multi_reduction <add>, %36, %cst_20 [1] : vector<4x256xf32> to vector<4xf32>
      %c0_21 = arith.constant 0 : index
      %c0_22 = arith.constant 0 : index
      %38 = vector.load %arg6[%c0_21, %c0_22] : memref<4x256xf32, #tpu.memory_space<vmem>>, vector<4x256xf32>
      %cst_23 = arith.constant dense<0.000000e+00> : vector<4xf32>
      %39 = vector.multi_reduction <add>, %38, %cst_23 [1] : vector<4x256xf32> to vector<4xf32>
      %cst_24 = arith.constant 2.000000e+00 : f32
      %40 = vector.broadcast %cst_24 : f32 to vector<4xf32>
      %41 = arith.mulf %40, %37 : vector<4xf32>
      %cst_25 = arith.constant 9.99999974E-6 : f32
      %42 = vector.broadcast %cst_25 : f32 to vector<4xf32>
      %43 = arith.addf %41, %42 : vector<4xf32>
      %cst_26 = arith.constant 9.99999974E-6 : f32
      %44 = vector.broadcast %cst_26 : f32 to vector<4xf32>
      %45 = arith.addf %39, %44 : vector<4xf32>
      %46 = arith.divf %43, %45 : vector<4xf32>
      %c0_27 = arith.constant 0 : index
      %c0_28 = arith.constant 0 : index
      %c0_29 = arith.constant 0 : index
      %47 = vector.load %arg4[%c0_27, %c0_28, %c0_29] : memref<1x1x4xf32, #tpu.memory_space<vmem>>, vector<1x1x4xf32>
      %48 = vector.shape_cast %47 : vector<1x1x4xf32> to vector<4xf32>
      %49 = vector.shape_cast %46 : vector<4xf32> to vector<1x1x4xf32>
      tpu.vector_store %arg4[%c0_27, %c0_28, %c0_29], %49 {strides = array<i32>} : memref<1x1x4xf32, #tpu.memory_space<vmem>>, vector<1x1x4xf32>,
    } else {
    }
    return
  }
  func.func @transform_0(%arg0: i32, %arg1: i32) -> (i32, i32, i32) {
    %c0_i32 = arith.constant 0 : i32
    %c0_i32_0 = arith.constant 0 : i32
    return %arg0, %c0_i32, %arg1 : i32, i32, i32
  }
  func.func @transform_1(%arg0: i32, %arg1: i32) -> (i32, i32, i32) {
    %c0_i32 = arith.constant 0 : i32
    %c0_i32_0 = arith.constant 0 : i32
    return %arg0, %c0_i32, %arg1 : i32, i32, i32
  }
  func.func @transform_2(%arg0: i32, %arg1: i32) -> (i32, i32, i32) {
    %c0_i32 = arith.constant 0 : i32
    %c0_i32_0 = arith.constant 0 : i32
    %c0_i32_1 = arith.constant 0 : i32
    return %arg0, %c0_i32, %c0_i32_0 : i32, i32, i32
  }
}

</mosaic_0001>

<llo_original>
// kernel: tpu_custom_call.1
$region0: #{tpu_custom_call.1}
  #allocation0 [shape = 'u32[]', space=smem, size = 0x4, offset = 0x4, fixed_abs, tag = 'smem constant byte address 0x4 - core index']
  #allocation1 [shape = 'u32[144,128]{1,0:T(1,128)}', space=vmem, size = 0x12000, scoped, tag = 'internal scratch']
  #allocation2 [shape = 'f32[4,256]{1,0:T(4,128)}', space=vmem, size = 0x1000, scoped, tag = 'scratch operand']
  #allocation3 [shape = 'f32[4,256]{1,0:T(4,128)}', space=vmem, size = 0x1000, scoped, tag = 'scratch operand']
  %s0 = inlined_call_operand.hbm [shape: f32[2,4,256], index: 0, kind: input, shape index: {}]
  %s1 = inlined_call_operand.vmem [shape: s8[2,1,256], index: 1, kind: input, shape index: {}]
  %s2 = inlined_call_operand.hbm [shape: f32[2,1,4], index: 2, kind: output, shape index: {}]
  %s3 = sld [smem:[#allocation0]]
  $region53: #{tpu_custom_call.1} parent=0
    _
  %s5 = ssub.s32 1, %s3
  %s6 = scalar_select 0, %s5, %s3
  $region1: #{tpu_custom_call.1} parent=0
    #allocation4 [shape = 'u8[8192]{0}', space=vmem, size = 0x2000, scoped, tag = 'input window, operand 0']
    #allocation5 [shape = 's32[2]{0}', space=sflag, size = 0x8, scoped, tag = 'scoped memory for tpu_custom_call.1']
    #allocation6 [shape = 's32[2]{0}', space=sflag, size = 0x8, scoped, tag = 'scoped memory for tpu_custom_call.1']
    #allocation7 [shape = 'u8[1024]{0}', space=vmem, size = 0x400, scoped, tag = 'output window, operand 0']
    %7 = vsyncpa [#allocation5], 0
    %s8 = scalar_lea.sflag [#allocation5], 1
    %9 = vsyncpa %s8, 0
    %10 = vsyncpa [#allocation6], 0
    %s11 = scalar_lea.sflag [#allocation6], 1
    %12 = vsyncpa %s11, 0
    loop: start=0, step=1, limit=4
    $region2: #{tpu_custom_call.1} parent=1 // loop_pre_header
      _
    $region3: #{tpu_custom_call.1} parent=1 // loop_header
      %s14 = sphi 0, %s18
      %p15 = scmp.ge.s32.totalorder %s14, 4
      %s21 = sphi 0, %s33
      %s22 = sphi 0, %s29
      %s23 = sphi 0, %s21
      %s24 = sphi 0, %s22
      %s25 = sphi 0, %s23
      %s26 = sphi 0, %s24
      %s38 = sphi 0, %s40
      %s41 = sphi 0, %s38
      %s42 = sphi 0, %s41
      %s58 = sphi 0, %s42
      %s66 = sphi 0, %s68
      %s69 = sphi 0, %s66
      %s70 = sphi 0, %s69
      %s86 = sphi 0, %s70
      %s92 = sphi 0, %s94
      %s95 = sphi 0, %s92
      %s96 = sphi 0, %s95
      %s112 = sphi 0, %s96
    $region4: #{tpu_custom_call.1} parent=1 // loop_header_branch
      %17 = sbr.rel (%p15) target = $region8
    $region5: #{tpu_custom_call.1} parent=1 // loop_body
      %s19 = ssub.s32 %s14, 1
      %s20 = ssub.s32 %s14, 2
      %s27 = sadd.s32 1, %s22
      %p28 = scmp.ge.s32.totalorder %s27, 1
      %s29 = scalar_select %p28, 0, %s27
      %s30 = sadd.s32 1, %s21
      %s31 = scalar_select %p28, %s30, %s21
      %p32 = scmp.ge.s32.totalorder %s31, 2
      %s33 = scalar_select %p32, 0, %s31
      %s34 = ssub.s32 %s21, %s33
      %s35 = ssub.s32 %s22, %s29
      %s36 = sor.u32 %s34, %s35
      %p37 = scmp.eq.s32.totalorder %s36, 0
      %s39 = sadd.s32 %s38, 1
      %s40 = scalar_select %p37, %s38, %s39
      %p43 = pneg %p37
      %p44 = scmp.eq.s32.totalorder %s14, 1
      %p45 = por %p43, %p44
      %p46 = scmp.ne.s32.totalorder %s38, %s41
      %p47 = scmp.eq.s32.totalorder %s14, 0
      %p48 = por %p46, %p47
      %p49 = scmp.ne.s32.totalorder %s38, %s41
      %p50 = scmp.eq.s32.totalorder %s19, 1
      %p51 = por %p49, %p50
      %p52 = scmp.ne.s32.totalorder %s41, %s42
      %p53 = scmp.eq.s32.totalorder %s19, 0
      %p54 = por %p52, %p53
      %p55 = scmp.ne.s32.totalorder %s41, %s42
      %p56 = scmp.eq.s32.totalorder %s20, 1
      %p57 = por %p55, %p56
      %p59 = scmp.ne.s32.totalorder %s42, %s58
      %p60 = scmp.eq.s32.totalorder %s20, 0
      %p61 = por %p59, %p60
      %s62 = ssub.s32 %s21, %s33
      %s63 = ssub.s32 %s22, %s29
      %s64 = sor.u32 %s62, %s63
      %p65 = scmp.eq.s32.totalorder %s64, 0
      %s67 = sadd.s32 %s66, 1
      %s68 = scalar_select %p65, %s66, %s67
      %p71 = pneg %p65
      %p72 = scmp.eq.s32.totalorder %s14, 1
      %p73 = por %p71, %p72
      %p74 = scmp.ne.s32.totalorder %s66, %s69
      %p75 = scmp.eq.s32.totalorder %s14, 0
      %p76 = por %p74, %p75
      %p77 = scmp.ne.s32.totalorder %s66, %s69
      %p78 = scmp.eq.s32.totalorder %s19, 1
      %p79 = por %p77, %p78
      %p80 = scmp.ne.s32.totalorder %s69, %s70
      %p81 = scmp.eq.s32.totalorder %s19, 0
      %p82 = por %p80, %p81
      %p83 = scmp.ne.s32.totalorder %s69, %s70
      %p84 = scmp.eq.s32.totalorder %s20, 1
      %p85 = por %p83, %p84
      %p87 = scmp.ne.s32.totalorder %s70, %s86
      %p88 = scmp.eq.s32.totalorder %s20, 0
      %p89 = por %p87, %p88
      %s90 = ssub.s32 %s21, %s33
      %p91 = scmp.eq.s32.totalorder %s90, 0
      %s93 = sadd.s32 %s92, 1
      %s94 = scalar_select %p91, %s92, %s93
      %p97 = pneg %p91
      %p98 = scmp.eq.s32.totalorder %s14, 1
      %p99 = por %p97, %p98
      %p100 = scmp.ne.s32.totalorder %s92, %s95
      %p101 = scmp.eq.s32.totalorder %s14, 0
      %p102 = por %p100, %p101
      %p103 = scmp.ne.s32.totalorder %s92, %s95
      %p104 = scmp.eq.s32.totalorder %s19, 1
      %p105 = por %p103, %p104
      %p106 = scmp.ne.s32.totalorder %s95, %s96
      %p107 = scmp.eq.s32.totalorder %s19, 0
      %p108 = por %p106, %p107
      %p109 = scmp.ne.s32.totalorder %s95, %s96
      %p110 = scmp.eq.s32.totalorder %s20, 1
      %p111 = por %p109, %p110
      %p113 = scmp.ne.s32.totalorder %s96, %s112
      %p114 = scmp.eq.s32.totalorder %s20, 0
      %p115 = por %p113, %p114
      %p116 = scmp.le.s32.totalorder 1, %s14
      %p117 = scmp.lt.s32.totalorder %s14, 3
      %p118 = pnand %p116, %p117
      %p119 = pneg %p118
      // Predicated region
      $region9: #{tpu_custom_call.1} parent=5 // pred_check
        _
      $region10: #{tpu_custom_call.1} parent=5 // pred_check_branch
        %121 = sbr.rel (%p118) target = $region12
      $region11: #{tpu_custom_call.1} parent=5 // pred_region
        %s122 = ssub.s32 %s14, 1
      $region12: #{tpu_custom_call.1} parent=5 // pred_fallthru
        _
      %p123 = scmp.lt.s32.totalorder %s14, 2
      // Predicated region
      $region13: #{tpu_custom_call.1} parent=5 // pred_check
        %p124 = pneg %p123
      $region14: #{tpu_custom_call.1} parent=5 // pred_check_branch
        %126 = sbr.rel (%p124) target = $region16
      $region15: #{tpu_custom_call.1} parent=5 // pred_region
        // Predicated region
        $region17: #{tpu_custom_call.1} parent=15 // pred_check
          %p127 = pneg %p48
        $region18: #{tpu_custom_call.1} parent=15 // pred_check_branch
          %129 = sbr.rel (%p127) target = $region20
        $region19: #{tpu_custom_call.1} parent=15 // pred_region
          %s130 = sand.u32 %s38, 1
          %s131 = scalar_lea.sflag [#allocation5], %s130
          %s132 = sand.u32 %s38, 1
          %s133 = smul.addr %s132, 8
          %s134 = scalar_lea.vmem [#allocation4], %s133
          %s135 = smul.u32 2, %s22
          %s137 = ssub.s32 128, 128
          %138 = vsyncadd %s131, %s137
          %s139 = smul.addr %s21, 2
          %s140 = sadd.s32 %s135, %s139
          %s141 = smul.addr %s140, 64
          %s142 = scalar_lea.hbm %s0, %s141
          %s144 = sshll.u32 %s134, 4
          %s145 = int_to_ptr.vmem [resolvable:$true] %s144
          %147 = dma.hbm_to_vmem [thread:$0]  %s142, 128, %s145, %s131
        $region20: #{tpu_custom_call.1} parent=15 // pred_fallthru
          _
        // Predicated region
        $region21: #{tpu_custom_call.1} parent=15 // pred_check
          %p148 = pneg %p76
        $region22: #{tpu_custom_call.1} parent=15 // pred_check_branch
          %150 = sbr.rel (%p148) target = $region24
        $region23: #{tpu_custom_call.1} parent=15 // pred_region
          %s151 = smul.u32 2, %s22
          %p152 = scmp.lt.s32.totalorder %s21, 1
          %s153 = scalar_select %p152, %s21, 1
          %p154 = scmp.lt.s32.totalorder %s151, 1
          %s155 = scalar_select %p154, %s151, 1
          %s156 = smul.addr %s153, 2
          %s157 = sadd.s32 %s155, %s156
          %s158 = scalar_lea.vmem %s1, %s157
          %s159 = smul.u32 2, %s22
        $region24: #{tpu_custom_call.1} parent=15 // pred_fallthru
          _
      $region16: #{tpu_custom_call.1} parent=5 // pred_fallthru
        _
      %p160 = scmp.le.s32.totalorder 1, %s14
      %p161 = scmp.lt.s32.totalorder %s14, 3
      %p162 = pnand %p160, %p161
      %p163 = pneg %p162
      // Predicated region
      $region25: #{tpu_custom_call.1} parent=5 // pred_check
        _
      $region26: #{tpu_custom_call.1} parent=5 // pred_check_branch
        %165 = sbr.rel (%p162) target = $region28
      $region27: #{tpu_custom_call.1} parent=5 // pred_region
        %s166 = ssub.s32 %s14, 1
        %s167 = sand.u32 %s41, 1
        %s168 = scalar_lea.sflag [#allocation5], %s167
        %s169 = sand.u32 %s41, 1
        %s170 = smul.addr %s169, 8
        %s171 = scalar_lea.vmem [#allocation4], %s170
        // Predicated region
        $region29: #{tpu_custom_call.1} parent=27 // pred_check
          %p172 = pneg %p54
        $region30: #{tpu_custom_call.1} parent=27 // pred_check_branch
          %174 = sbr.rel (%p172) target = $region32
        $region31: #{tpu_custom_call.1} parent=27 // pred_region
          %175 = dma.done %s168, 128
        $region32: #{tpu_custom_call.1} parent=27 // pred_fallthru
          _
        %s176 = sand.u32 %s41, 1
        %s177 = scalar_lea.sflag [#allocation5], %s176
        %s178 = sand.u32 %s41, 1
        %s179 = smul.addr %s178, 8
        %s180 = scalar_lea.vmem [#allocation4], %s179
        %p181 = pneg %p54
        %p182 = pneg %p51
        %s183 = smul.u32 2, %s24
        %p184 = scmp.lt.s32.totalorder %s23, 1
        %s185 = scalar_select %p184, %s23, 1
        %p186 = scmp.lt.s32.totalorder %s183, 1
        %s187 = scalar_select %p186, %s183, 1
        %s188 = smul.addr %s185, 2
        %s189 = sadd.s32 %s187, %s188
        %s190 = scalar_lea.vmem %s1, %s189
        %p191 = pneg %p82
        %p192 = pneg %p79
        %p193 = pneg %p108
        %p194 = pneg %p105
        %s195 = sand.u32 %s95, 1
        %s196 = scalar_lea.sflag [#allocation6], %s195
        %s197 = sand.u32 %s95, 1
        %s198 = scalar_lea.vmem [#allocation7], %s197
        %s199 = smul.u32 2, %s24
        %s200 = smul.u32 2, %s24
        %p201 = scmp.lt.s32.totalorder %s23, 1
        %s202 = scalar_select %p201, %s23, 1
        %p203 = scmp.lt.s32.totalorder %s200, 1
        %s204 = scalar_select %p203, %s200, 1
        %s205 = smul.addr %s202, 2
        %s206 = sadd.s32 %s204, %s205
        %s207 = scalar_lea.vmem %s1, %s206
        %s208 = smul.u32 2, %s24
        %p209 = scmp.eq.s32.totalorder %s24, 0
        // Predicated region
        $region33: #{tpu_custom_call.1} parent=27 // pred_check
          %p210 = pneg %p209
        $region34: #{tpu_custom_call.1} parent=27 // pred_check_branch
          %212 = sbr.rel (%p210) target = $region36
        $region35: #{tpu_custom_call.1} parent=27 // pred_region
          %213 = vst [vmem:[#allocation2] sm:$0xff] 0.0
          %214 = vst [vmem:[#allocation3] sm:$0xff] 0.0
        $region36: #{tpu_custom_call.1} parent=27 // pred_fallthru
          _
        %v215 = vld [vmem:[%s171] sm:$0xff]
        %v216 = vld [vmem:[%s207] sm:$0x3]
        %v217 = vunpack.c.0.s8 %v216
        %v219 = vcombine.high %v215, %v215
        %vm221 = vcmask 1043456
        %v222 = vsel %vm221, %v215, -inf
        %v223 = vrot.slane %v222, 4
        %v224 = vmax.f32 %v222, %v223
        %v225 = vrot.slane %v224, 2
        %v226 = vmax.f32 %v224, %v225
        %v227 = vrot.slane %v226, 1
        %v228 = vmax.f32 %v226, %v227
        %v229 = vsel %vm221, %v219, -inf
        %v230 = vrot.slane %v229, 4
        %v231 = vmax.f32 %v229, %v230
        %v232 = vrot.slane %v231, 2
        %v233 = vmax.f32 %v231, %v232
        %v234 = vrot.slane %v233, 1
        %v235 = vmax.f32 %v233, %v234
        %v238 = vcombine.low %v228, %v235
        %v240 = vsub.f32 %v215, %v238
        %v241 = vmul.f32 %v240, 1.442695
        %v242 = vpow.pop %v241
        %v244 = vcombine.high %v242, %v242
        %v246 = vsel %vm221, %v242, 0.0
        %v247 = vrot.slane %v246, 4
        %v248 = vadd.f32 %v246, %v247
        %v249 = vrot.slane %v248, 2
        %v250 = vadd.f32 %v248, %v249
        %v251 = vrot.slane %v250, 1
        %v252 = vadd.f32 %v250, %v251
        %v253 = vsel %vm221, %v244, 0.0
        %v254 = vrot.slane %v253, 4
        %v255 = vadd.f32 %v253, %v254
        %v256 = vrot.slane %v255, 2
        %v257 = vadd.f32 %v255, %v256
        %v258 = vrot.slane %v257, 1
        %v259 = vadd.f32 %v257, %v258
        %v260 = vrcp.pop %v252
        %v261 = vrcp.pop %v259
        %v264 = vcombine.low %v260, %v261
        %v266 = vmul.f32 %v242, %v264
        %v267 = vlaneseq
        %v268 = vshrl.u32 %v267, 7
        %v269 = vlaneseq
        %v270 = vshrl.u32 %v269, 7
        %v271 = vsub.s32 0, %v270
        %v272 = vrot.slane %v217, %v271
        %v273 = vlaneseq
        %v274 = vshrl.u32 %v273, 7
        %v275 = vsub.s32 4, %v274
        %v276 = vrot.slane %v217, %v275
        %v277 = vlaneseq
        %v278 = vshrl.u32 %v277, 7
        %v279 = vsub.s32 0, %v278
        %v280 = vrot.slane %v272, %v279
        %v281 = vlaneseq
        %v282 = vshrl.u32 %v281, 7
        %v283 = vsub.s32 0, %v282
        %v284 = vrot.slane %v276, %v283
        %vm285 = vcmp.eq.s32.totalorder %v268, %v280
        %vm286 = vcmp.eq.s32.totalorder %v268, %v284
        %v287 = vld [vmem:[#allocation2] sm:$0xff]
        %v289 = vcombine.high %v266, %v266
        %v291 = vsel %vm285, %v266, 0.0
        %v292 = vsel %vm286, %v289, 0.0
        %v295 = vcombine.low %v291, %v292
        %v297 = vadd.f32 %v287, %v295
        %298 = vst [vmem:[#allocation2] sm:$0xff] %v297
        %v299 = vld [vmem:[#allocation3] sm:$0xff]
        %v300 = vmul.f32 %v266, %v266
        %v301 = vsel %vm285, 1, 0
        %v302 = vsel %vm286, 1, 0
        %v303 = vcvt.s32.f32 %v301
        %v304 = vcvt.s32.f32 %v302
        %v307 = vcombine.low %v303, %v304
        %v309 = vadd.f32 %v300, %v307
        %v310 = vadd.f32 %v299, %v309
        %311 = vst [vmem:[#allocation3] sm:$0xff] %v310
        // Predicated region
        $region37: #{tpu_custom_call.1} parent=27 // pred_check
          %p312 = pneg %p209
        $region38: #{tpu_custom_call.1} parent=27 // pred_check_branch
          %314 = sbr.rel (%p312) target = $region40
        $region39: #{tpu_custom_call.1} parent=27 // pred_region
          %v315 = vld [vmem:[#allocation2] sm:$0xff]
          %v317 = vcombine.high %v315, %v315
          %v319 = vsel %vm221, %v315, 0.0
          %v320 = vsel %vm221, %v317, 0.0
          %v321 = vadd.f32 %v319, %v320
          %322 = vadd.xlane.f32.xlu0 %v321
          %v323 = vpop.xlane.xlu0 %322
          %v324 = vld [vmem:[#allocation3] sm:$0xff]
          %v326 = vcombine.high %v324, %v324
          %v328 = vsel %vm221, %v324, 0.0
          %v329 = vsel %vm221, %v326, 0.0
          %v330 = vadd.f32 %v328, %v329
          %331 = vadd.xlane.f32.xlu0 %v330
          %v332 = vpop.xlane.xlu0 %331
          %v333 = vmul.f32 %v323, 2.0
          %v334 = vadd.f32 %v333, 1e-05
          %v335 = vadd.f32 %v332, 1e-05
          %v336 = vrcp.pop %v335
          %v337 = vmul.f32 %v334, %v336
          %v339 = vlaneseq
          %v340 = vand.u32 %v339, 127
          %v341 = vlaneseq
          %v342 = vshrl.u32 %v341, 7
          %v343 = vsub.s32 %v340, %v342
          %v344 = vrot.slane %v337, %v343
          %vm346 = vcmask 24576
          %347 = vst.msk [vmem:[%s198] sm:$0x1] %vm346, %v344
        $region40: #{tpu_custom_call.1} parent=27 // pred_fallthru
          _
        %s348 = sand.u32 %s95, 1
        %s349 = scalar_lea.sflag [#allocation6], %s348
        %s350 = sand.u32 %s95, 1
        %s351 = scalar_lea.vmem [#allocation7], %s350
        // Predicated region
        $region41: #{tpu_custom_call.1} parent=27 // pred_check
          %p352 = pneg %p105
        $region42: #{tpu_custom_call.1} parent=27 // pred_check_branch
          %354 = sbr.rel (%p352) target = $region44
        $region43: #{tpu_custom_call.1} parent=27 // pred_region
          %s356 = ssub.s32 16, 16
          %357 = vsyncadd %s349, %s356
          %s358 = smul.addr %s23, 16
          %s359 = scalar_lea.hbm %s2, %s358
          %s361 = sshll.u32 %s351, 4
          %s362 = int_to_ptr.vmem [resolvable:$true] %s361
          %364 = dma.vmem_to_hbm [thread:$0]  %s362, 16, %s359, %s349
        $region44: #{tpu_custom_call.1} parent=27 // pred_fallthru
          _
      $region28: #{tpu_custom_call.1} parent=5 // pred_fallthru
        _
      %p365 = scmp.le.s32.totalorder 2, %s14
      // Predicated region
      $region45: #{tpu_custom_call.1} parent=5 // pred_check
        %p366 = pneg %p365
      $region46: #{tpu_custom_call.1} parent=5 // pred_check_branch
        %368 = sbr.rel (%p366) target = $region48
      $region47: #{tpu_custom_call.1} parent=5 // pred_region
        %s369 = ssub.s32 %s14, 2
        // Predicated region
        $region49: #{tpu_custom_call.1} parent=47 // pred_check
          %p370 = pneg %p111
        $region50: #{tpu_custom_call.1} parent=47 // pred_check_branch
          %372 = sbr.rel (%p370) target = $region52
        $region51: #{tpu_custom_call.1} parent=47 // pred_region
          %s373 = sand.u32 %s96, 1
          %s374 = scalar_lea.sflag [#allocation6], %s373
          %s375 = sand.u32 %s96, 1
          %s376 = scalar_lea.vmem [#allocation7], %s375
          %377 = dma.done %s374, 16
        $region52: #{tpu_custom_call.1} parent=47 // pred_fallthru
          _
      $region48: #{tpu_custom_call.1} parent=5 // pred_fallthru
        _
    $region6: #{tpu_custom_call.1} parent=1 // loop_footer
      %s18 = sadd.s32 1, %s14
    $region7: #{tpu_custom_call.1} parent=1 // loop_footer_branch
      %13 = sbr.rel target = $region3
    $region8: #{tpu_custom_call.1} parent=1 // loop_exit
      _
    %378 = vsyncpa [#allocation5], 1
    %s379 = scalar_lea.sflag [#allocation5], 1
    %380 = vsyncpa %s379, 1
    %381 = vsyncpa [#allocation6], 1
    %s382 = scalar_lea.sflag [#allocation6], 1
    %383 = vsyncpa %s382, 1

</llo_original>
